<compile_context>
chip_gen: v6e
topology: v6e:2x2x1
jax: 0.10.0
libtpu: 0.0.40
codegen_flags: <defaults>
</compile_context>

<pallas_src>
import functools

import jax
import jax.numpy as jnp
from jax.experimental import pallas as pl
from jax.experimental.pallas import tpu as pltpu


_MAX_ROW_TILE = 4096  # diminishing returns past a few thousand rows


def _vmem_limit_bytes():
    """Generation-aware scoped-VMEM limit (leaves headroom for compiler scratch)."""
    try:
        cap = int(pltpu.get_tpu_info().vmem_capacity_bytes)
    except Exception:
        cap = 64 << 20  # conservative: v7x per-TensorCore VMEM
    return int(max(min(cap - (8 << 20), 100 << 20), 16 << 20))


def _choose_row_tile(n_rows, n_classes, itemsize, vmem_limit):
    """Largest row tile (multiple of the sublane pack) that fits the VMEM budget."""
    mult = 16 if itemsize == 2 else 8
    budget = vmem_limit // 2
    # Per-row VMEM cost: double-buffered logits + targets pipeline buffers plus
    # ~6 full-width f32 intermediates the elementwise section materializes.
    bytes_per_row = 2 * (n_classes * itemsize + 4) + 6 * n_classes * 4 + 16
    tn = budget // max(bytes_per_row, 1)
    tn = max(mult, min(int(tn), _MAX_ROW_TILE))
    tn = (tn // mult) * mult
    tn = min(tn, max(mult, (n_rows // mult) * mult))
    return int(tn)


def _focal_block_kernel(logits_ref, targets_ref, alpha_ref, out_ref, *,
                        gamma, total_n):
    i = pl.program_id(0)
    tn = logits_ref.shape[0]

    x = logits_ref[...].astype(jnp.float32)            # (tn, C)
    t = targets_ref[...]                               # (tn, 1) int32
    alpha = alpha_ref[...].astype(jnp.float32)         # (1, C)

    # ---- log-softmax pieces (lane-axis reductions go to the XLU) ----
    m = jnp.max(x, axis=-1, keepdims=True)             # (tn, 1)
    z = x - m
    lse = jnp.log(jnp.sum(jnp.exp(z), axis=-1, keepdims=True))  # (tn, 1)

    # ---- gather target column via boolean select (no f32 one-hot, no
    #      full-tile log_probs = z - lse materialization) ----
    cls = jax.lax.broadcasted_iota(jnp.int32, x.shape, 1)
    sel = cls == t                                      # (tn, C) bool
    z_t = jnp.sum(jnp.where(sel, z, 0.0), axis=-1, keepdims=True)        # (tn, 1)
    alpha_t = jnp.sum(jnp.where(sel, alpha, 0.0), axis=-1, keepdims=True)  # (tn, 1)

    log_pt = z_t - lse                                  # (tn, 1), <= 0
    pt = jnp.exp(log_pt)
    one_minus_pt = jnp.maximum(1.0 - pt, 0.0)
    if gamma == 0.0:
        focal_weight = jnp.ones_like(one_minus_pt)
    elif gamma == 1.0:
        focal_weight = one_minus_pt
    elif gamma == 1.5:
        focal_weight = one_minus_pt * jnp.sqrt(one_minus_pt)
    elif gamma == 2.0:
        focal_weight = one_minus_pt * one_minus_pt
    else:
        focal_weight = jnp.power(one_minus_pt, jnp.float32(gamma))

    loss = alpha_t * focal_weight * (-log_pt)           # (tn, 1)

    # Mask rows past the true N (ragged last block / wrapper padding); select
    # (not multiply) so garbage/NaN padded rows cannot leak through.
    row = jax.lax.broadcasted_iota(jnp.int32, (tn, 1), 0) + i * tn
    loss = jnp.where(row < total_n, loss, 0.0)

    # One cross-sublane reduce per (large) block; splat the partial into this
    # block's (1, 8, 128) output slot (lane/sublane-aligned, unmasked store).
    partial = jnp.sum(loss)
    out_ref[...] = jnp.full(out_ref.shape, partial, dtype=jnp.float32)


def frequency_weighted_focal_loss(logits, targets, alpha, gamma=1.5, tn=None):
    """logits: [..., C] float, targets: [...] int, alpha: [C] float.
    Returns the scalar mean focal loss (matches the PyTorch module's forward)."""
    C = logits.shape[-1]
    logits2d = logits.reshape(-1, C)
    N = logits2d.shape[0]
    targets2d = targets.reshape(-1, 1).astype(jnp.int32)
    alpha2d = alpha.reshape(1, C).astype(jnp.float32)

    itemsize = jnp.dtype(logits2d.dtype).itemsize
    mult = 16 if itemsize == 2 else 8
    if N < mult:  # pad tiny inputs up to one sublane pack; padded rows are masked
        pad = mult - N
        logits2d = jnp.pad(logits2d, ((0, pad), (0, 0)))
        targets2d = jnp.pad(targets2d, ((0, pad), (0, 0)))
    n_rows = logits2d.shape[0]

    vmem_limit = _vmem_limit_bytes()
    if tn is None:
        tn = _choose_row_tile(n_rows, C, itemsize, vmem_limit)
    num_blocks = pl.cdiv(n_rows, tn)

    kernel = functools.partial(_focal_block_kernel, gamma=float(gamma), total_n=N)

    partials = pl.pallas_call(
        kernel,
        out_shape=jax.ShapeDtypeStruct((num_blocks, 8, 128), jnp.float32),
        grid_spec=pltpu.PrefetchScalarGridSpec(
            num_scalar_prefetch=0,
            grid=(num_blocks,),
            in_specs=[
                pl.BlockSpec((tn, C), lambda i: (i, 0)),   # logits row tile
                pl.BlockSpec((tn, 1), lambda i: (i, 0)),   # targets row tile
                pl.BlockSpec((1, C), lambda i: (0, 0)),    # alpha (resident)
            ],
            out_specs=pl.BlockSpec((1, 8, 128), lambda i: (i, 0, 0)),
        ),
        compiler_params=pltpu.CompilerParams(
            dimension_semantics=("parallel",),   # independent blocks -> megacore on v7x
            vmem_limit_bytes=vmem_limit,
        ),
    )(logits2d, targets2d, alpha2d)

    # Tiny epilogue reduce over per-block partials; divide by the true N.
    return jnp.sum(partials[:, 0, 0]) / jnp.float32(N)


def _reference(logits, targets, alpha, gamma=1.5):
    # Pure-JAX reference mirroring the PyTorch module.
    log_probs = jax.nn.log_softmax(logits, axis=-1)
    log_pt = jnp.take_along_axis(log_probs, targets[..., None], axis=-1)[..., 0]
    pt = jnp.exp(log_pt)
    focal_weight = (1.0 - pt) ** gamma
    alpha_factor = alpha[targets]
    return jnp.mean(alpha_factor * focal_weight * (-log_pt))


if __name__ == "__main__":
    key = jax.random.PRNGKey(0)
    k1, k2, k3 = jax.random.split(key, 3)

    batch, seq, num_classes = 2, 8, 32
    gamma = 1.5

    logits = jax.random.normal(k1, (batch, seq, num_classes), dtype=jnp.float32)
    targets = jax.random.randint(k2, (batch, seq), 0, num_classes, dtype=jnp.int32)
    # deterministic synthetic frequency weights (shape [num_classes])
    alpha = jax.random.uniform(k3, (num_classes,), dtype=jnp.float32,
                               minval=0.1, maxval=1.0)

    loss = frequency_weighted_focal_loss(logits, targets, alpha, gamma=gamma)
    loss = jax.block_until_ready(loss)

    ref = _reference(logits, targets, alpha, gamma=gamma)
    assert jnp.allclose(loss, ref, rtol=1e-5, atol=1e-6), (loss, ref)

    print("KERNEL_OK")
</pallas_src>

<mosaic_0001>
module attributes {stable_mosaic.version = 11 : i64} {
  func.func @_focal_block_kernel(%arg0: i32, %arg1: memref<16x32xf32, #tpu.memory_space<vmem>>, %arg2: memref<16x1xi32, #tpu.memory_space<vmem>>, %arg3: memref<1x32xf32, #tpu.memory_space<vmem>>, %arg4: memref<1x8x128xf32, #tpu.memory_space<vmem>>) attributes {dimension_semantics = [#tpu.dimension_semantics<parallel>], iteration_bounds = array<i64: 1>, scalar_prefetch = 0 : i64, scratch_operands = 0 : i64, tpu.core_type = #tpu.core_type<tc>, window_params = [{transform_indices = @transform_0, window_bounds = array<i64: 16, 32>}, {transform_indices = @transform_1, window_bounds = array<i64: 16, 1>}, {pipeline_mode = #tpu.pipeline_mode<synchronous>, transform_indices = @transform_2, window_bounds = array<i64: 1, 32>}, {transform_indices = @transform_3, window_bounds = array<i64: 1, 8, 128>}]} {
    %c0 = arith.constant 0 : index
    %c0_0 = arith.constant 0 : index
    %0 = vector.load %arg1[%c0, %c0_0] : memref<16x32xf32, #tpu.memory_space<vmem>>, vector<16x32xf32>
    %c0_1 = arith.constant 0 : index
    %c0_2 = arith.constant 0 : index
    %1 = vector.load %arg2[%c0_1, %c0_2] : memref<16x1xi32, #tpu.memory_space<vmem>>, vector<16x1xi32>
    %c0_3 = arith.constant 0 : index
    %c0_4 = arith.constant 0 : index
    %2 = vector.load %arg3[%c0_3, %c0_4] : memref<1x32xf32, #tpu.memory_space<vmem>>, vector<1x32xf32>
    %cst = arith.constant dense<0xFF800000> : vector<16xf32>
    %3 = vector.multi_reduction <maximumf>, %0, %cst [1] : vector<16x32xf32> to vector<16xf32>
    %4 = vector.shape_cast %3 : vector<16xf32> to vector<16x1xf32>
    %5 = vector.broadcast %4 : vector<16x1xf32> to vector<16x32xf32>
    %6 = arith.subf %0, %5 : vector<16x32xf32>
    %7 = math.exp %6 : vector<16x32xf32>
    %cst_5 = arith.constant dense<0.000000e+00> : vector<16xf32>
    %8 = vector.multi_reduction <add>, %7, %cst_5 [1] : vector<16x32xf32> to vector<16xf32>
    %9 = vector.shape_cast %8 : vector<16xf32> to vector<16x1xf32>
    %10 = math.log %9 : vector<16x1xf32>
    %11 = tpu.iota {dimensions = array<i32: 1>} : vector<16x32xi32>
    %12 = vector.broadcast %1 : vector<16x1xi32> to vector<16x32xi32>
    %13 = arith.cmpi eq, %11, %12 : vector<16x32xi32>
    %cst_6 = arith.constant 0.000000e+00 : f32
    %14 = vector.broadcast %cst_6 : f32 to vector<16x32xf32>
    %15 = arith.select %13, %6, %14 : vector<16x32xi1>, vector<16x32xf32>
    %cst_7 = arith.constant dense<0.000000e+00> : vector<16xf32>
    %16 = vector.multi_reduction <add>, %15, %cst_7 [1] : vector<16x32xf32> to vector<16xf32>
    %17 = vector.shape_cast %16 : vector<16xf32> to vector<16x1xf32>
    %cst_8 = arith.constant 0.000000e+00 : f32
    %18 = vector.shape_cast %2 : vector<1x32xf32> to vector<1x32xf32>
    %19 = vector.broadcast %18 : vector<1x32xf32> to vector<16x32xf32>
    %20 = vector.broadcast %cst_8 : f32 to vector<16x32xf32>
    %21 = arith.select %13, %19, %20 : vector<16x32xi1>, vector<16x32xf32>
    %cst_9 = arith.constant dense<0.000000e+00> : vector<16xf32>
    %22 = vector.multi_reduction <add>, %21, %cst_9 [1] : vector<16x32xf32> to vector<16xf32>
    %23 = vector.shape_cast %22 : vector<16xf32> to vector<16x1xf32>
    %24 = arith.subf %17, %10 : vector<16x1xf32>
    %25 = math.exp %24 : vector<16x1xf32>
    %cst_10 = arith.constant 1.000000e+00 : f32
    %26 = vector.broadcast %cst_10 : f32 to vector<16x1xf32>
    %27 = arith.subf %26, %25 : vector<16x1xf32>
    %cst_11 = arith.constant 0.000000e+00 : f32
    %28 = vector.broadcast %cst_11 : f32 to vector<16x1xf32>
    %29 = arith.maximumf %27, %28 : vector<16x1xf32>
    %30 = math.sqrt %29 : vector<16x1xf32>
    %31 = arith.mulf %29, %30 : vector<16x1xf32>
    %32 = arith.mulf %23, %31 : vector<16x1xf32>
    %cst_12 = arith.constant 0.000000e+00 : f32
    %33 = vector.broadcast %cst_12 : f32 to vector<16x1xf32>
    %34 = arith.subf %33, %24 : vector<16x1xf32>
    %35 = arith.mulf %32, %34 : vector<16x1xf32>
    %36 = tpu.iota {dimensions = array<i32: 0>} : vector<16x1xi32>
    %c16_i32 = arith.constant 16 : i32
    %37 = arith.muli %arg0, %c16_i32 : i32
    %38 = vector.broadcast %37 : i32 to vector<16x1xi32>
    %39 = arith.addi %36, %38 : vector<16x1xi32>
    %c16_i32_13 = arith.constant 16 : i32
    %40 = vector.broadcast %c16_i32_13 : i32 to vector<16x1xi32>
    %41 = arith.cmpi slt, %39, %40 : vector<16x1xi32>
    %cst_14 = arith.constant 0.000000e+00 : f32
    %42 = vector.broadcast %cst_14 : f32 to vector<16x1xf32>
    %43 = arith.select %41, %35, %42 : vector<16x1xi1>, vector<16x1xf32>
    %44 = vector.shape_cast %43 : vector<16x1xf32> to vector<1x16x1xf32>
    %cst_15 = arith.constant dense<0.000000e+00> : vector<1xf32>
    %45 = vector.multi_reduction <add>, %44, %cst_15 [1, 2] : vector<1x16x1xf32> to vector<1xf32>
    %46 = vector.shape_cast %45 : vector<1xf32> to vector<1x1x1xf32>
    %47 = vector.extract %46[0, 0, 0] : f32 from vector<1x1x1xf32>
    %48 = vector.broadcast %47 : f32 to vector<1x8x128xf32>
    %c0_16 = arith.constant 0 : index
    %c0_17 = arith.constant 0 : index
    %c0_18 = arith.constant 0 : index
    %49 = vector.load %arg4[%c0_16, %c0_17, %c0_18] : memref<1x8x128xf32, #tpu.memory_space<vmem>>, vector<1x8x128xf32>
    tpu.vector_store %arg4[%c0_16, %c0_17, %c0_18], %48 {strides = array<i32>} : memref<1x8x128xf32, #tpu.memory_space<vmem>>, vector<1x8x128xf32>,
    return
  }
  func.func @transform_0(%arg0: i32) -> (i32, i32) {
    %c0_i32 = arith.constant 0 : i32
    %c0_i32_0 = arith.constant 0 : i32
    return %arg0, %c0_i32 : i32, i32
  }
  func.func @transform_1(%arg0: i32) -> (i32, i32) {
    %c0_i32 = arith.constant 0 : i32
    %c0_i32_0 = arith.constant 0 : i32
    return %arg0, %c0_i32 : i32, i32
  }
  func.func @transform_2(%arg0: i32) -> (i32, i32) {
    %c0_i32 = arith.constant 0 : i32
    %c0_i32_0 = arith.constant 0 : i32
    %c0_i32_1 = arith.constant 0 : i32
    return %c0_i32, %c0_i32_0 : i32, i32
  }
  func.func @transform_3(%arg0: i32) -> (i32, i32, i32) {
    %c0_i32 = arith.constant 0 : i32
    %c0_i32_0 = arith.constant 0 : i32
    %c0_i32_1 = arith.constant 0 : i32
    return %arg0, %c0_i32, %c0_i32_0 : i32, i32, i32
  }
}

</mosaic_0001>

<llo_original>
// kernel: tpu_custom_call.1
$region0: #{tpu_custom_call.1}
  #allocation0 [shape = 'u32[]', space=smem, size = 0x4, offset = 0x4, fixed_abs, tag = 'smem constant byte address 0x4 - core index']
  #allocation1 [shape = 'u32[144,128]{1,0:T(1,128)}', space=vmem, size = 0x12000, scoped, tag = 'internal scratch']
  %s0 = inlined_call_operand.vmem [shape: f32[16,32], index: 0, kind: input, shape index: {}]
  %s1 = inlined_call_operand.vmem [shape: s32[16,1], index: 1, kind: input, shape index: {}]
  %s2 = inlined_call_operand.vmem [shape: f32[1,32], index: 2, kind: input, shape index: {}]
  %s3 = inlined_call_operand.hbm [shape: f32[1,8,128], index: 3, kind: output, shape index: {}]
  %s4 = sld [smem:[#allocation0]]
  $region22: #{tpu_custom_call.1} parent=0
    _
  %s6 = ssub.s32 1, %s4
  %s7 = scalar_select 0, %s6, %s4
  $region1: #{tpu_custom_call.1} parent=0
    #allocation2 [shape = 'u8[4096]{0}', space=vmem, size = 0x1000, scoped, tag = 'output window, operand 0, single buffered']
    #allocation3 [shape = 's32[1]{0}', space=sflag, size = 0x4, scoped, tag = 'scoped memory for tpu_custom_call.1']
    %8 = vsyncpa [#allocation3], 0
    // Predicated region
    $region2: #{tpu_custom_call.1} parent=1 // pred_check
      _
    $region3: #{tpu_custom_call.1} parent=1 // pred_check_branch
      %10 = sbr.rel (0) target = $region5
    $region4: #{tpu_custom_call.1} parent=1 // pred_region
      _
    $region5: #{tpu_custom_call.1} parent=1 // pred_fallthru
      _
    // Predicated region
    $region6: #{tpu_custom_call.1} parent=1 // pred_check
      _
    $region7: #{tpu_custom_call.1} parent=1 // pred_check_branch
      %12 = sbr.rel (0) target = $region9
    $region8: #{tpu_custom_call.1} parent=1 // pred_region
      _
    $region9: #{tpu_custom_call.1} parent=1 // pred_fallthru
      _
    // Predicated region
    $region10: #{tpu_custom_call.1} parent=1 // pred_check
      _
    $region11: #{tpu_custom_call.1} parent=1 // pred_check_branch
      %14 = sbr.rel (0) target = $region13
    $region12: #{tpu_custom_call.1} parent=1 // pred_region
      _
    $region13: #{tpu_custom_call.1} parent=1 // pred_fallthru
      _
    %v15 = vld [vmem:[%s0] sm:$0xff]
    %v16 = vld [vmem:[%s0 + $0x8] sm:$0xff]
    %v17 = vld [vmem:[%s1] sm:$0xff]
    %v18 = vld [vmem:[%s1 + $0x8] sm:$0xff]
    %v19 = vld [vmem:[%s2] sm:$0x1]
    %vm20 = vcmask 261120
    %v21 = vsel %vm20, %v15, -inf
    %22 = vmax.xlane.f32.xlu0 %v21
    %v23 = vpop.xlane.xlu0 %22
    %v24 = vsel %vm20, %v16, -inf
    %25 = vmax.xlane.f32.xlu0 %v24
    %v26 = vpop.xlane.xlu0 %25
    %v27 = vsub.f32 %v15, %v23
    %v28 = vsub.f32 %v16, %v26
    %v29 = vmul.f32 %v27, 1.442695
    %v30 = vpow.pop %v29
    %v31 = vmul.f32 %v28, 1.442695
    %v32 = vpow.pop %v31
    %v33 = vsel %vm20, %v30, 0.0
    %34 = vadd.xlane.f32.xlu0 %v33
    %v35 = vpop.xlane.xlu0 %34
    %v36 = vsel %vm20, %v32, 0.0
    %37 = vadd.xlane.f32.xlu0 %v36
    %v38 = vpop.xlane.xlu0 %37
    %v39 = vlog2.pop %v35
    %v40 = vmul.f32 %v39, 0.6931472
    %v41 = vlog2.pop %v38
    %v42 = vmul.f32 %v41, 0.6931472
    %v43 = vlaneseq
    %v44 = vand.u32 %v43, 127
    %45 = vset.pattern.permute.xlu0 0
    %46 = vperm.xlu0 %45, %v17
    %v47 = vpop.permute.xlu0 %46
    %48 = vset.pattern.permute.xlu0 0
    %49 = vperm.xlu0 %48, %v18
    %v50 = vpop.permute.xlu0 %49
    %vm51 = vcmp.eq.s32.totalorder %v44, %v47
    %vm52 = vcmp.eq.s32.totalorder %v44, %v50
    %v53 = vsel %vm51, %v27, 0.0
    %v54 = vsel %vm52, %v28, 0.0
    %v55 = vsel %vm20, %v53, 0.0
    %56 = vadd.xlane.f32.xlu0 %v55
    %v57 = vpop.xlane.xlu0 %56
    %v58 = vsel %vm20, %v54, 0.0
    %59 = vadd.xlane.f32.xlu0 %v58
    %v60 = vpop.xlane.xlu0 %59
    %v62 = vlaneseq
    %v63 = vshrl.u32 %v62, 7
    %v64 = vsub.s32 0, %v63
    %v65 = vrot.slane %v19, %v64
    %v67 = vsel %vm51, %v65, 0.0
    %v68 = vsel %vm52, %v65, 0.0
    %v69 = vsel %vm20, %v67, 0.0
    %70 = vadd.xlane.f32.xlu0 %v69
    %v71 = vpop.xlane.xlu0 %70
    %v72 = vsel %vm20, %v68, 0.0
    %73 = vadd.xlane.f32.xlu0 %v72
    %v74 = vpop.xlane.xlu0 %73
    %v75 = vsub.f32 %v57, %v40
    %v76 = vsub.f32 %v60, %v42
    %v77 = vmul.f32 %v75, 1.442695
    %v78 = vpow.pop %v77
    %v79 = vmul.f32 %v76, 1.442695
    %v80 = vpow.pop %v79
    %v81 = vsub.f32 1.0, %v78
    %v82 = vsub.f32 1.0, %v80
    %v83 = vmax.f32 %v81, 0.0
    %v84 = vmax.f32 %v82, 0.0
    %v85 = vrsqrt.pop %v83
    %v86 = vmul.f32 %v83, %v85
    %vm87 = vcmp.eq.f32.partialorder %v83, inf
    %v88 = vsel %vm87, %v83, %v86
    %vm89 = vcmp.eq.f32.partialorder %v83, 0.0
    %v90 = vand.u32 %v83, 2147483648
    %v91 = vsel %vm89, %v90, %v88
    %v92 = vrsqrt.pop %v84
    %v93 = vmul.f32 %v84, %v92
    %vm94 = vcmp.eq.f32.partialorder %v84, inf
    %v95 = vsel %vm94, %v84, %v93
    %vm96 = vcmp.eq.f32.partialorder %v84, 0.0
    %v97 = vand.u32 %v84, 2147483648
    %v98 = vsel %vm96, %v97, %v95
    %v99 = vmul.f32 %v83, %v91
    %v100 = vmul.f32 %v84, %v98
    %v101 = vmul.f32 %v71, %v99
    %v102 = vmul.f32 %v74, %v100
    %v103 = vsub.f32 0.0, %v75
    %v104 = vsub.f32 0.0, %v76
    %v105 = vmul.f32 %v101, %v103
    %v106 = vmul.f32 %v102, %v104
    %v107 = vlaneseq
    %v108 = vshrl.u32 %v107, 7
    %v109 = vadd.s32 %v108, 8
    %s110 = smul.u32 0, 16
    %v111 = vstv %s110
    %v112 = vadd.s32 %v108, %v111
    %v113 = vadd.s32 %v109, %v111
    %vm114 = vcmp.lt.s32.totalorder %v112, 16
    %vm115 = vcmp.lt.s32.totalorder %v113, 16
    %v116 = vsel %vm114, %v105, 0.0
    %v117 = vsel %vm115, %v106, 0.0
    %vm118 = vcmask 7168
    %v119 = vsel %vm118, %v116, 0.0
    %v120 = vsel %vm118, %v117, 0.0
    %v121 = vadd.f32 %v119, %v120
    %122 = vadd.xlane.f32.xlu0 %v121
    %v123 = vpop.xlane.xlu0 %122
    %v124 = vrot.slane %v123, 4
    %v125 = vadd.f32 %v123, %v124
    %v126 = vrot.slane %v125, 2
    %v127 = vadd.f32 %v125, %v126
    %v128 = vrot.slane %v127, 1
    %v129 = vadd.f32 %v127, %v128
    %s130 = vtos %v129
    %v131 = vstv %s130
    %132 = vst [vmem:[#allocation2] sm:$0xff] %v131
    // Predicated region
    $region14: #{tpu_custom_call.1} parent=1 // pred_check
      _
    $region15: #{tpu_custom_call.1} parent=1 // pred_check_branch
      %134 = sbr.rel (0) target = $region17
    $region16: #{tpu_custom_call.1} parent=1 // pred_region
      %s136 = ssub.s32 128, 128
      %137 = vsyncadd [#allocation3], %s136
      %s139 = sshll.u32 [#allocation2], 4
      %s140 = int_to_ptr.vmem [resolvable:$true] %s139
      %142 = dma.vmem_to_hbm [thread:$0]  %s140, 128, %s3, [#allocation3]
    $region17: #{tpu_custom_call.1} parent=1 // pred_fallthru
      _
    // Predicated region
    $region18: #{tpu_custom_call.1} parent=1 // pred_check
      _
    $region19: #{tpu_custom_call.1} parent=1 // pred_check_branch
      %144 = sbr.rel (0) target = $region21
    $region20: #{tpu_custom_call.1} parent=1 // pred_region
      %145 = dma.done [#allocation3], 128
    $region21: #{tpu_custom_call.1} parent=1 // pred_fallthru
      _
    %146 = vsyncpa [#allocation3], 1

</llo_original>
